<compile_context>
chip_gen: v7x
topology: tpu7x:2x2x1
jax: 0.10.0
libtpu: 0.0.40
codegen_flags: <defaults>
</compile_context>

<pallas_src>
import jax
import jax.numpy as jnp
import numpy as np
from jax import lax
from jax.experimental import pallas as pl
from jax.experimental.pallas import tpu as pltpu

_LANES = 128


def _conv1x1_relu_mean_kernel(w_ref, b_ref, x_ref, o_ref):
    """Fused 1x1-conv + ReLU + channel-mean on the VPU.

    w_ref: SMEM (Cout, Cin) f32       b_ref: SMEM (Cout,) f32
    x_ref: VMEM (1, Cin, TR, 128) f32 pixel tile (lanes = pixels)
    o_ref: VMEM (1, TR, 128) f32
    """
    cout, cin = w_ref.shape
    xs = [x_ref[0, c, :, :] for c in range(cin)]      # each (TR, 128)
    acc = None
    for o in range(cout):                              # Cout=7, statically unrolled
        y = xs[0] * w_ref[o, 0]
        for c in range(1, cin):
            y = y + xs[c] * w_ref[o, c]
        y = jnp.maximum(y + b_ref[o], 0.0)             # ReLU
        acc = y if acc is None else acc + y
    o_ref[0, :, :] = acc * (1.0 / cout)                # mean over output channels


def model_forward(x, weight, bias, *, block_rows=512):
    """x: (N, Cin, H, W) f32; weight: (Cout, Cin, 1, 1); bias: (Cout,).
    Returns (N, H+2, W+2) f32 (conv padding=1 with 1x1 kernel)."""
    N, Cin, H, W = x.shape
    Cout = weight.shape[0]
    P = H * W

    # Lane-dense tiling: flatten pixels into rows of 128 lanes.
    R = -(-P // _LANES)                       # rows of 128 pixels
    TR = min(block_rows, R)
    if N == 1 and TR == R and R >= 16:
        # Split rows so the grid has >= 2 steps (v7x megacore sharding / overlap).
        TR = (((R + 1) // 2) + 7) // 8 * 8
    Rp = -(-R // TR) * TR                     # rows padded to a tile multiple

    xr = x.reshape(N, Cin, P).astype(jnp.float32)      # contiguous reshape, no copy
    pad = Rp * _LANES - P
    if pad:
        xr = jnp.pad(xr, ((0, 0), (0, 0), (0, pad)))
    xr = xr.reshape(N, Cin, Rp, _LANES)

    w2 = weight.reshape(Cout, Cin).astype(jnp.float32)  # -> SMEM scalars
    b1 = bias.astype(jnp.float32)                       # -> SMEM scalars

    out = pl.pallas_call(
        _conv1x1_relu_mean_kernel,
        out_shape=jax.ShapeDtypeStruct((N, Rp, _LANES), jnp.float32),
        grid_spec=pltpu.PrefetchScalarGridSpec(
            num_scalar_prefetch=2,            # weights + bias live in SMEM, read once
            grid=(N, Rp // TR),
            in_specs=[
                pl.BlockSpec((1, Cin, TR, _LANES),
                             lambda n, r, w_s, b_s: (n, 0, r, 0)),
            ],
            out_specs=pl.BlockSpec((1, TR, _LANES),
                                   lambda n, r, w_s, b_s: (n, r, 0)),
        ),
        compiler_params=pltpu.CompilerParams(
            dimension_semantics=("parallel", "parallel")),
    )(w2, b1, xr)

    interior = out.reshape(N, Rp * _LANES)[:, :P].reshape(N, H, W)

    # padding=1 with a 1x1 kernel: every border pixel sees zero input, so its
    # output is the constant mean(ReLU(bias)); fill analytically in f32.
    border = jnp.mean(jnp.maximum(b1, 0.0))
    return lax.pad(interior, border, [(0, 0, 0), (1, 1, 0), (1, 1, 0)])


def _reference(x, weight, bias):
    # pure-JAX reference of the PyTorch forward
    y = lax.conv_general_dilated(
        x, weight, window_strides=(1, 1), padding=((1, 1), (1, 1)),
        dimension_numbers=("NCHW", "OIHW", "NCHW"),
        precision=lax.Precision.HIGHEST)
    y = y + bias.reshape(1, -1, 1, 1)
    y = jnp.maximum(y, 0.0)
    return jnp.mean(y, axis=1)


if __name__ == "__main__":
    key = jax.random.PRNGKey(0)
    kx, kw, kb = jax.random.split(key, 3)

    # small shapes consistent with the module (Cin=3, Cout=7 fixed by the conv)
    N, Cin, Cout, H, W = 2, 3, 7, 16, 16
    x = jax.random.normal(kx, (N, Cin, H, W), dtype=jnp.float32)

    # deterministic parameter init (mimics PyTorch's uniform fan-in bounds)
    fan_in = Cin * 1 * 1
    bound = 1.0 / np.sqrt(fan_in)
    weight = jax.random.uniform(kw, (Cout, Cin, 1, 1), jnp.float32, -bound, bound)
    bias = jax.random.uniform(kb, (Cout,), jnp.float32, -bound, bound)

    fwd = jax.jit(model_forward, static_argnames=("block_rows",))
    out = jax.block_until_ready(fwd(x, weight, bias))

    ref = _reference(x, weight, bias)
    np.testing.assert_allclose(np.asarray(out), np.asarray(ref),
                               rtol=1e-5, atol=1e-5)
    assert out.shape == (N, H + 2, W + 2)
    print("KERNEL_OK")
</pallas_src>

<mosaic_0001>
module attributes {stable_mosaic.version = 11 : i64} {
  func.func @_conv1x1_relu_mean_kernel(%arg0: i32, %arg1: i32, %arg2: memref<7x3xf32, #tpu.memory_space<smem>>, %arg3: memref<7xf32, #tpu.memory_space<smem>>, %arg4: memref<1x3x2x128xf32, #tpu.memory_space<vmem>>, %arg5: memref<1x2x128xf32, #tpu.memory_space<vmem>>) attributes {dimension_semantics = [#tpu.dimension_semantics<parallel>, #tpu.dimension_semantics<parallel>], iteration_bounds = array<i64: 2, 1>, scalar_prefetch = 2 : i64, scratch_operands = 0 : i64, tpu.core_type = #tpu.core_type<tc>, window_params = [{transform_indices = @transform_0, window_bounds = array<i64: 1, 3, 2, 128>}, {transform_indices = @transform_1, window_bounds = array<i64: 1, 2, 128>}]} {
    %c0 = arith.constant 0 : index
    %c0_0 = arith.constant 0 : index
    %c0_1 = arith.constant 0 : index
    %c0_2 = arith.constant 0 : index
    %0 = vector.load %arg4[%c0, %c0_0, %c0_1, %c0_2] : memref<1x3x2x128xf32, #tpu.memory_space<vmem>>, vector<1x1x2x128xf32>
    %1 = vector.shape_cast %0 : vector<1x1x2x128xf32> to vector<2x128xf32>
    %c0_3 = arith.constant 0 : index
    %c1 = arith.constant 1 : index
    %c0_4 = arith.constant 0 : index
    %c0_5 = arith.constant 0 : index
    %2 = vector.load %arg4[%c0_3, %c1, %c0_4, %c0_5] : memref<1x3x2x128xf32, #tpu.memory_space<vmem>>, vector<1x1x2x128xf32>
    %3 = vector.shape_cast %2 : vector<1x1x2x128xf32> to vector<2x128xf32>
    %c0_6 = arith.constant 0 : index
    %c2 = arith.constant 2 : index
    %c0_7 = arith.constant 0 : index
    %c0_8 = arith.constant 0 : index
    %4 = vector.load %arg4[%c0_6, %c2, %c0_7, %c0_8] : memref<1x3x2x128xf32, #tpu.memory_space<vmem>>, vector<1x1x2x128xf32>
    %5 = vector.shape_cast %4 : vector<1x1x2x128xf32> to vector<2x128xf32>
    %c0_9 = arith.constant 0 : index
    %c0_10 = arith.constant 0 : index
    %6 = memref.load %arg2[%c0_9, %c0_10] : memref<7x3xf32, #tpu.memory_space<smem>>
    %7 = vector.broadcast %6 : f32 to vector<2x128xf32>
    %8 = arith.mulf %1, %7 : vector<2x128xf32>
    %c0_11 = arith.constant 0 : index
    %c1_12 = arith.constant 1 : index
    %9 = memref.load %arg2[%c0_11, %c1_12] : memref<7x3xf32, #tpu.memory_space<smem>>
    %10 = vector.broadcast %9 : f32 to vector<2x128xf32>
    %11 = arith.mulf %3, %10 : vector<2x128xf32>
    %12 = arith.addf %8, %11 : vector<2x128xf32>
    %c0_13 = arith.constant 0 : index
    %c2_14 = arith.constant 2 : index
    %13 = memref.load %arg2[%c0_13, %c2_14] : memref<7x3xf32, #tpu.memory_space<smem>>
    %14 = vector.broadcast %13 : f32 to vector<2x128xf32>
    %15 = arith.mulf %5, %14 : vector<2x128xf32>
    %16 = arith.addf %12, %15 : vector<2x128xf32>
    %c0_15 = arith.constant 0 : index
    %17 = memref.load %arg3[%c0_15] : memref<7xf32, #tpu.memory_space<smem>>
    %18 = vector.broadcast %17 : f32 to vector<2x128xf32>
    %19 = arith.addf %16, %18 : vector<2x128xf32>
    %cst = arith.constant 0.000000e+00 : f32
    %20 = vector.broadcast %cst : f32 to vector<2x128xf32>
    %21 = arith.maximumf %19, %20 : vector<2x128xf32>
    %c1_16 = arith.constant 1 : index
    %c0_17 = arith.constant 0 : index
    %22 = memref.load %arg2[%c1_16, %c0_17] : memref<7x3xf32, #tpu.memory_space<smem>>
    %23 = vector.broadcast %22 : f32 to vector<2x128xf32>
    %24 = arith.mulf %1, %23 : vector<2x128xf32>
    %c1_18 = arith.constant 1 : index
    %c1_19 = arith.constant 1 : index
    %25 = memref.load %arg2[%c1_18, %c1_19] : memref<7x3xf32, #tpu.memory_space<smem>>
    %26 = vector.broadcast %25 : f32 to vector<2x128xf32>
    %27 = arith.mulf %3, %26 : vector<2x128xf32>
    %28 = arith.addf %24, %27 : vector<2x128xf32>
    %c1_20 = arith.constant 1 : index
    %c2_21 = arith.constant 2 : index
    %29 = memref.load %arg2[%c1_20, %c2_21] : memref<7x3xf32, #tpu.memory_space<smem>>
    %30 = vector.broadcast %29 : f32 to vector<2x128xf32>
    %31 = arith.mulf %5, %30 : vector<2x128xf32>
    %32 = arith.addf %28, %31 : vector<2x128xf32>
    %c1_22 = arith.constant 1 : index
    %33 = memref.load %arg3[%c1_22] : memref<7xf32, #tpu.memory_space<smem>>
    %34 = vector.broadcast %33 : f32 to vector<2x128xf32>
    %35 = arith.addf %32, %34 : vector<2x128xf32>
    %cst_23 = arith.constant 0.000000e+00 : f32
    %36 = vector.broadcast %cst_23 : f32 to vector<2x128xf32>
    %37 = arith.maximumf %35, %36 : vector<2x128xf32>
    %38 = arith.addf %21, %37 : vector<2x128xf32>
    %c2_24 = arith.constant 2 : index
    %c0_25 = arith.constant 0 : index
    %39 = memref.load %arg2[%c2_24, %c0_25] : memref<7x3xf32, #tpu.memory_space<smem>>
    %40 = vector.broadcast %39 : f32 to vector<2x128xf32>
    %41 = arith.mulf %1, %40 : vector<2x128xf32>
    %c2_26 = arith.constant 2 : index
    %c1_27 = arith.constant 1 : index
    %42 = memref.load %arg2[%c2_26, %c1_27] : memref<7x3xf32, #tpu.memory_space<smem>>
    %43 = vector.broadcast %42 : f32 to vector<2x128xf32>
    %44 = arith.mulf %3, %43 : vector<2x128xf32>
    %45 = arith.addf %41, %44 : vector<2x128xf32>
    %c2_28 = arith.constant 2 : index
    %c2_29 = arith.constant 2 : index
    %46 = memref.load %arg2[%c2_28, %c2_29] : memref<7x3xf32, #tpu.memory_space<smem>>
    %47 = vector.broadcast %46 : f32 to vector<2x128xf32>
    %48 = arith.mulf %5, %47 : vector<2x128xf32>
    %49 = arith.addf %45, %48 : vector<2x128xf32>
    %c2_30 = arith.constant 2 : index
    %50 = memref.load %arg3[%c2_30] : memref<7xf32, #tpu.memory_space<smem>>
    %51 = vector.broadcast %50 : f32 to vector<2x128xf32>
    %52 = arith.addf %49, %51 : vector<2x128xf32>
    %cst_31 = arith.constant 0.000000e+00 : f32
    %53 = vector.broadcast %cst_31 : f32 to vector<2x128xf32>
    %54 = arith.maximumf %52, %53 : vector<2x128xf32>
    %55 = arith.addf %38, %54 : vector<2x128xf32>
    %c3 = arith.constant 3 : index
    %c0_32 = arith.constant 0 : index
    %56 = memref.load %arg2[%c3, %c0_32] : memref<7x3xf32, #tpu.memory_space<smem>>
    %57 = vector.broadcast %56 : f32 to vector<2x128xf32>
    %58 = arith.mulf %1, %57 : vector<2x128xf32>
    %c3_33 = arith.constant 3 : index
    %c1_34 = arith.constant 1 : index
    %59 = memref.load %arg2[%c3_33, %c1_34] : memref<7x3xf32, #tpu.memory_space<smem>>
    %60 = vector.broadcast %59 : f32 to vector<2x128xf32>
    %61 = arith.mulf %3, %60 : vector<2x128xf32>
    %62 = arith.addf %58, %61 : vector<2x128xf32>
    %c3_35 = arith.constant 3 : index
    %c2_36 = arith.constant 2 : index
    %63 = memref.load %arg2[%c3_35, %c2_36] : memref<7x3xf32, #tpu.memory_space<smem>>
    %64 = vector.broadcast %63 : f32 to vector<2x128xf32>
    %65 = arith.mulf %5, %64 : vector<2x128xf32>
    %66 = arith.addf %62, %65 : vector<2x128xf32>
    %c3_37 = arith.constant 3 : index
    %67 = memref.load %arg3[%c3_37] : memref<7xf32, #tpu.memory_space<smem>>
    %68 = vector.broadcast %67 : f32 to vector<2x128xf32>
    %69 = arith.addf %66, %68 : vector<2x128xf32>
    %cst_38 = arith.constant 0.000000e+00 : f32
    %70 = vector.broadcast %cst_38 : f32 to vector<2x128xf32>
    %71 = arith.maximumf %69, %70 : vector<2x128xf32>
    %72 = arith.addf %55, %71 : vector<2x128xf32>
    %c4 = arith.constant 4 : index
    %c0_39 = arith.constant 0 : index
    %73 = memref.load %arg2[%c4, %c0_39] : memref<7x3xf32, #tpu.memory_space<smem>>
    %74 = vector.broadcast %73 : f32 to vector<2x128xf32>
    %75 = arith.mulf %1, %74 : vector<2x128xf32>
    %c4_40 = arith.constant 4 : index
    %c1_41 = arith.constant 1 : index
    %76 = memref.load %arg2[%c4_40, %c1_41] : memref<7x3xf32, #tpu.memory_space<smem>>
    %77 = vector.broadcast %76 : f32 to vector<2x128xf32>
    %78 = arith.mulf %3, %77 : vector<2x128xf32>
    %79 = arith.addf %75, %78 : vector<2x128xf32>
    %c4_42 = arith.constant 4 : index
    %c2_43 = arith.constant 2 : index
    %80 = memref.load %arg2[%c4_42, %c2_43] : memref<7x3xf32, #tpu.memory_space<smem>>
    %81 = vector.broadcast %80 : f32 to vector<2x128xf32>
    %82 = arith.mulf %5, %81 : vector<2x128xf32>
    %83 = arith.addf %79, %82 : vector<2x128xf32>
    %c4_44 = arith.constant 4 : index
    %84 = memref.load %arg3[%c4_44] : memref<7xf32, #tpu.memory_space<smem>>
    %85 = vector.broadcast %84 : f32 to vector<2x128xf32>
    %86 = arith.addf %83, %85 : vector<2x128xf32>
    %cst_45 = arith.constant 0.000000e+00 : f32
    %87 = vector.broadcast %cst_45 : f32 to vector<2x128xf32>
    %88 = arith.maximumf %86, %87 : vector<2x128xf32>
    %89 = arith.addf %72, %88 : vector<2x128xf32>
    %c5 = arith.constant 5 : index
    %c0_46 = arith.constant 0 : index
    %90 = memref.load %arg2[%c5, %c0_46] : memref<7x3xf32, #tpu.memory_space<smem>>
    %91 = vector.broadcast %90 : f32 to vector<2x128xf32>
    %92 = arith.mulf %1, %91 : vector<2x128xf32>
    %c5_47 = arith.constant 5 : index
    %c1_48 = arith.constant 1 : index
    %93 = memref.load %arg2[%c5_47, %c1_48] : memref<7x3xf32, #tpu.memory_space<smem>>
    %94 = vector.broadcast %93 : f32 to vector<2x128xf32>
    %95 = arith.mulf %3, %94 : vector<2x128xf32>
    %96 = arith.addf %92, %95 : vector<2x128xf32>
    %c5_49 = arith.constant 5 : index
    %c2_50 = arith.constant 2 : index
    %97 = memref.load %arg2[%c5_49, %c2_50] : memref<7x3xf32, #tpu.memory_space<smem>>
    %98 = vector.broadcast %97 : f32 to vector<2x128xf32>
    %99 = arith.mulf %5, %98 : vector<2x128xf32>
    %100 = arith.addf %96, %99 : vector<2x128xf32>
    %c5_51 = arith.constant 5 : index
    %101 = memref.load %arg3[%c5_51] : memref<7xf32, #tpu.memory_space<smem>>
    %102 = vector.broadcast %101 : f32 to vector<2x128xf32>
    %103 = arith.addf %100, %102 : vector<2x128xf32>
    %cst_52 = arith.constant 0.000000e+00 : f32
    %104 = vector.broadcast %cst_52 : f32 to vector<2x128xf32>
    %105 = arith.maximumf %103, %104 : vector<2x128xf32>
    %106 = arith.addf %89, %105 : vector<2x128xf32>
    %c6 = arith.constant 6 : index
    %c0_53 = arith.constant 0 : index
    %107 = memref.load %arg2[%c6, %c0_53] : memref<7x3xf32, #tpu.memory_space<smem>>
    %108 = vector.broadcast %107 : f32 to vector<2x128xf32>
    %109 = arith.mulf %1, %108 : vector<2x128xf32>
    %c6_54 = arith.constant 6 : index
    %c1_55 = arith.constant 1 : index
    %110 = memref.load %arg2[%c6_54, %c1_55] : memref<7x3xf32, #tpu.memory_space<smem>>
    %111 = vector.broadcast %110 : f32 to vector<2x128xf32>
    %112 = arith.mulf %3, %111 : vector<2x128xf32>
    %113 = arith.addf %109, %112 : vector<2x128xf32>
    %c6_56 = arith.constant 6 : index
    %c2_57 = arith.constant 2 : index
    %114 = memref.load %arg2[%c6_56, %c2_57] : memref<7x3xf32, #tpu.memory_space<smem>>
    %115 = vector.broadcast %114 : f32 to vector<2x128xf32>
    %116 = arith.mulf %5, %115 : vector<2x128xf32>
    %117 = arith.addf %113, %116 : vector<2x128xf32>
    %c6_58 = arith.constant 6 : index
    %118 = memref.load %arg3[%c6_58] : memref<7xf32, #tpu.memory_space<smem>>
    %119 = vector.broadcast %118 : f32 to vector<2x128xf32>
    %120 = arith.addf %117, %119 : vector<2x128xf32>
    %cst_59 = arith.constant 0.000000e+00 : f32
    %121 = vector.broadcast %cst_59 : f32 to vector<2x128xf32>
    %122 = arith.maximumf %120, %121 : vector<2x128xf32>
    %123 = arith.addf %106, %122 : vector<2x128xf32>
    %cst_60 = arith.constant 0.142857149 : f32
    %124 = vector.broadcast %cst_60 : f32 to vector<2x128xf32>
    %125 = arith.mulf %123, %124 : vector<2x128xf32>
    %c0_61 = arith.constant 0 : index
    %c0_62 = arith.constant 0 : index
    %c0_63 = arith.constant 0 : index
    %126 = vector.load %arg5[%c0_61, %c0_62, %c0_63] : memref<1x2x128xf32, #tpu.memory_space<vmem>>, vector<1x2x128xf32>
    %127 = vector.shape_cast %126 : vector<1x2x128xf32> to vector<2x128xf32>
    %128 = vector.shape_cast %125 : vector<2x128xf32> to vector<1x2x128xf32>
    tpu.vector_store %arg5[%c0_61, %c0_62, %c0_63], %128 {strides = array<i32>} : memref<1x2x128xf32, #tpu.memory_space<vmem>>, vector<1x2x128xf32>,
    return
  }
  func.func @transform_0(%arg0: i32, %arg1: i32, %arg2: memref<7x3xf32, #tpu.memory_space<smem>>, %arg3: memref<7xf32, #tpu.memory_space<smem>>) -> (i32, i32, i32, i32) {
    %c0_i32 = arith.constant 0 : i32
    %c0_i32_0 = arith.constant 0 : i32
    %c0_i32_1 = arith.constant 0 : i32
    return %arg0, %c0_i32, %arg1, %c0_i32_0 : i32, i32, i32, i32
  }
  func.func @transform_1(%arg0: i32, %arg1: i32, %arg2: memref<7x3xf32, #tpu.memory_space<smem>>, %arg3: memref<7xf32, #tpu.memory_space<smem>>) -> (i32, i32, i32) {
    %c0_i32 = arith.constant 0 : i32
    %c0_i32_0 = arith.constant 0 : i32
    return %arg0, %arg1, %c0_i32 : i32, i32, i32
  }
}

</mosaic_0001>

<llo_original>
// kernel: model_forward.1
$region0: #{model_forward.1}
  #allocation0 [shape = 'u32[]', space=smem, size = 0x4, offset = 0x4, fixed_abs, tag = 'smem constant byte address 0x4 - core index']
  #allocation1 [shape = 'u32[144,128]{1,0:T(1,128)}', space=vmem, size = 0x12000, scoped, tag = 'internal scratch']
  #allocation2 [shape = 's32[1]{0}', space=sflag, size = 0x4, scoped, tag = 'scoped memory for model_forward.1']
  #allocation3 [shape = 'u8[4096]{0}', space=smem, size = 0x1000, scoped, tag = 'prefetched SMEM operand 0']
  #allocation4 [shape = 'u8[512]{0}', space=smem, size = 0x200, scoped, tag = 'prefetched SMEM operand 1']
  %s0 = inlined_call_operand.vmem [shape: f32[7,3], index: 0, kind: input, shape index: {}]
  %s1 = inlined_call_operand.vmem [shape: f32[7], index: 1, kind: input, shape index: {}]
  %s2 = inlined_call_operand.vmem [shape: f32[2,3,2,128], index: 2, kind: input, shape index: {}]
  %s3 = inlined_call_operand.vmem [shape: f32[2,2,128], index: 3, kind: output, shape index: {}]
  %s4 = sld [smem:[#allocation0]]
  $region37: #{model_forward.1} parent=0
    _
  %s6 = ssub.s32 1, %s4
  %s7 = scalar_select 0, %s6, %s4
  %s8 = sshll.u32 %s0, 4
  %s9 = int_to_ptr.vmem [resolvable:$true] %s8
  %11 = dma.vmem_to_smem %s9, 128, [#allocation3], [#allocation2]
  %s12 = sshll.u32 %s1, 4
  %s13 = int_to_ptr.vmem [resolvable:$true] %s12
  %15 = dma.vmem_to_smem %s13, 16, [#allocation4], [#allocation2]
  %16 = dma.done [#allocation2], 144
  %17 = sfence
  loop: start=0, step=1, limit=4
  $region2: #{model_forward.1} parent=0 // loop_pre_header
    _
  $region3: #{model_forward.1} parent=0 // loop_header
    %s19 = sphi 0, %s23
    %p20 = scmp.ge.s32.totalorder %s19, 4
    %s26 = sphi 0, %s38
    %s27 = sphi 0, %s34
    %s28 = sphi 0, %s26
    %s29 = sphi 0, %s27
    %s30 = sphi 0, %s28
    %s31 = sphi 0, %s29
    %s43 = sphi 0, %s45
    %s46 = sphi 0, %s43
    %s47 = sphi 0, %s46
    %s63 = sphi 0, %s47
    %s71 = sphi 0, %s73
    %s74 = sphi 0, %s71
    %s75 = sphi 0, %s74
    %s91 = sphi 0, %s75
  $region4: #{model_forward.1} parent=0 // loop_header_branch
    %22 = sbr.rel (%p20) target = $region8
  $region5: #{model_forward.1} parent=0 // loop_body
    %s24 = ssub.s32 %s19, 1
    %s25 = ssub.s32 %s19, 2
    %s32 = sadd.s32 1, %s27
    %p33 = scmp.ge.s32.totalorder %s32, 1
    %s34 = scalar_select %p33, 0, %s32
    %s35 = sadd.s32 1, %s26
    %s36 = scalar_select %p33, %s35, %s26
    %p37 = scmp.ge.s32.totalorder %s36, 2
    %s38 = scalar_select %p37, 0, %s36
    %s39 = ssub.s32 %s26, %s38
    %s40 = ssub.s32 %s27, %s34
    %s41 = sor.u32 %s39, %s40
    %p42 = scmp.eq.s32.totalorder %s41, 0
    %s44 = sadd.s32 %s43, 1
    %s45 = scalar_select %p42, %s43, %s44
    %p48 = pneg %p42
    %p49 = scmp.eq.s32.totalorder %s19, 1
    %p50 = por %p48, %p49
    %p51 = scmp.ne.s32.totalorder %s43, %s46
    %p52 = scmp.eq.s32.totalorder %s19, 0
    %p53 = por %p51, %p52
    %p54 = scmp.ne.s32.totalorder %s43, %s46
    %p55 = scmp.eq.s32.totalorder %s24, 1
    %p56 = por %p54, %p55
    %p57 = scmp.ne.s32.totalorder %s46, %s47
    %p58 = scmp.eq.s32.totalorder %s24, 0
    %p59 = por %p57, %p58
    %p60 = scmp.ne.s32.totalorder %s46, %s47
    %p61 = scmp.eq.s32.totalorder %s25, 1
    %p62 = por %p60, %p61
    %p64 = scmp.ne.s32.totalorder %s47, %s63
    %p65 = scmp.eq.s32.totalorder %s25, 0
    %p66 = por %p64, %p65
    %s67 = ssub.s32 %s26, %s38
    %s68 = ssub.s32 %s27, %s34
    %s69 = sor.u32 %s67, %s68
    %p70 = scmp.eq.s32.totalorder %s69, 0
    %s72 = sadd.s32 %s71, 1
    %s73 = scalar_select %p70, %s71, %s72
    %p76 = pneg %p70
    %p77 = scmp.eq.s32.totalorder %s19, 1
    %p78 = por %p76, %p77
    %p79 = scmp.ne.s32.totalorder %s71, %s74
    %p80 = scmp.eq.s32.totalorder %s19, 0
    %p81 = por %p79, %p80
    %p82 = scmp.ne.s32.totalorder %s71, %s74
    %p83 = scmp.eq.s32.totalorder %s24, 1
    %p84 = por %p82, %p83
    %p85 = scmp.ne.s32.totalorder %s74, %s75
    %p86 = scmp.eq.s32.totalorder %s24, 0
    %p87 = por %p85, %p86
    %p88 = scmp.ne.s32.totalorder %s74, %s75
    %p89 = scmp.eq.s32.totalorder %s25, 1
    %p90 = por %p88, %p89
    %p92 = scmp.ne.s32.totalorder %s75, %s91
    %p93 = scmp.eq.s32.totalorder %s25, 0
    %p94 = por %p92, %p93
    %p95 = scmp.le.s32.totalorder 1, %s19
    %p96 = scmp.lt.s32.totalorder %s19, 3
    %p97 = pnand %p95, %p96
    %p98 = pneg %p97
    // Predicated region
    $region9: #{model_forward.1} parent=5 // pred_check
      _
    $region10: #{model_forward.1} parent=5 // pred_check_branch
      %100 = sbr.rel (%p97) target = $region12
    $region11: #{model_forward.1} parent=5 // pred_region
      %s101 = ssub.s32 %s19, 1
    $region12: #{model_forward.1} parent=5 // pred_fallthru
      _
    %p102 = scmp.lt.s32.totalorder %s19, 2
    // Predicated region
    $region13: #{model_forward.1} parent=5 // pred_check
      %p103 = pneg %p102
    $region14: #{model_forward.1} parent=5 // pred_check_branch
      %105 = sbr.rel (%p103) target = $region16
    $region15: #{model_forward.1} parent=5 // pred_region
      // Predicated region
      $region17: #{model_forward.1} parent=15 // pred_check
        %p106 = pneg %p53
      $region18: #{model_forward.1} parent=15 // pred_check_branch
        %108 = sbr.rel (%p106) target = $region20
      $region19: #{model_forward.1} parent=15 // pred_region
        %p109 = scmp.lt.s32.totalorder %s26, 1
        %s110 = scalar_select %p109, %s26, 1
        %p111 = scmp.lt.s32.totalorder %s27, 0
        %s112 = scalar_select %p111, %s27, 0
        %s113 = smul.addr %s110, 3
        %s114 = sadd.s32 %s112, %s113
        %s115 = smul.addr %s114, 2
        %s116 = scalar_lea.vmem %s2, %s115
      $region20: #{model_forward.1} parent=15 // pred_fallthru
        _
    $region16: #{model_forward.1} parent=5 // pred_fallthru
      _
    %p117 = scmp.le.s32.totalorder 1, %s19
    %p118 = scmp.lt.s32.totalorder %s19, 3
    %p119 = pnand %p117, %p118
    %p120 = pneg %p119
    // Predicated region
    $region21: #{model_forward.1} parent=5 // pred_check
      _
    $region22: #{model_forward.1} parent=5 // pred_check_branch
      %122 = sbr.rel (%p119) target = $region24
    $region23: #{model_forward.1} parent=5 // pred_region
      %s123 = ssub.s32 %s19, 1
      %p124 = scmp.lt.s32.totalorder %s28, 1
      %s125 = scalar_select %p124, %s28, 1
      %p126 = scmp.lt.s32.totalorder %s29, 0
      %s127 = scalar_select %p126, %s29, 0
      %s128 = smul.addr %s125, 3
      %s129 = sadd.s32 %s127, %s128
      %s130 = smul.addr %s129, 2
      %s131 = scalar_lea.vmem %s2, %s130
      %p132 = pneg %p59
      %p133 = pneg %p56
      %p134 = pneg %p87
      %p135 = pneg %p84
      %p136 = scmp.lt.s32.totalorder %s28, 1
      %s137 = scalar_select %p136, %s28, 1
      %p138 = scmp.lt.s32.totalorder %s29, 0
      %s139 = scalar_select %p138, %s29, 0
      %s140 = sadd.s32 %s139, %s137
      %s141 = smul.addr %s140, 2
      %s142 = scalar_lea.vmem %s3, %s141
      %p143 = scmp.lt.s32.totalorder %s28, 1
      %s144 = scalar_select %p143, %s28, 1
      %p145 = scmp.lt.s32.totalorder %s29, 0
      %s146 = scalar_select %p145, %s29, 0
      %s147 = smul.addr %s144, 3
      %s148 = sadd.s32 %s146, %s147
      %s149 = smul.addr %s148, 2
      %s150 = scalar_lea.vmem %s2, %s149
      %p151 = scmp.lt.s32.totalorder %s28, 1
      %s152 = scalar_select %p151, %s28, 1
      %p153 = scmp.lt.s32.totalorder %s29, 0
      %s154 = scalar_select %p153, %s29, 0
      %s155 = sadd.s32 %s154, %s152
      %s156 = smul.addr %s155, 2
      %s157 = scalar_lea.vmem %s3, %s156
      %v158 = vld [vmem:[%s150] sm:$0x3]
      %s159 = scalar_lea.vmem %s150, 2
      %v160 = vld [vmem:[%s159] sm:$0x3]
      %s161 = scalar_lea.vmem %s150, 4
      %v162 = vld [vmem:[%s161] sm:$0x3]
      %s163 = sld [smem:[#allocation3]]
      %v164 = vstv %s163
      %v165 = vmul.f32 %v158, %v164
      %s166 = sld [smem:[#allocation3 + $0x1]]
      %v167 = vstv %s166
      %v168 = vmul.f32 %v160, %v167
      %v169 = vadd.f32 %v165, %v168
      %s170 = sld [smem:[#allocation3 + $0x2]]
      %v171 = vstv %s170
      %v172 = vmul.f32 %v162, %v171
      %v173 = vadd.f32 %v169, %v172
      %s174 = sld [smem:[#allocation4]]
      %v175 = vstv %s174
      %v176 = vadd.f32 %v173, %v175
      %v177 = vmax.f32 %v176, 0.0
      %s178 = sld [smem:[#allocation3 + $0x80]]
      %v179 = vstv %s178
      %v180 = vmul.f32 %v158, %v179
      %s181 = sld [smem:[#allocation3 + $0x81]]
      %v182 = vstv %s181
      %v183 = vmul.f32 %v160, %v182
      %v184 = vadd.f32 %v180, %v183
      %s185 = sld [smem:[#allocation3 + $0x82]]
      %v186 = vstv %s185
      %v187 = vmul.f32 %v162, %v186
      %v188 = vadd.f32 %v184, %v187
      %s189 = sld [smem:[#allocation4 + $0x1]]
      %v190 = vstv %s189
      %v191 = vadd.f32 %v188, %v190
      %v192 = vmax.f32 %v191, 0.0
      %v193 = vadd.f32 %v177, %v192
      %s194 = sld [smem:[#allocation3 + $0x100]]
      %v195 = vstv %s194
      %v196 = vmul.f32 %v158, %v195
      %s197 = sld [smem:[#allocation3 + $0x101]]
      %v198 = vstv %s197
      %v199 = vmul.f32 %v160, %v198
      %v200 = vadd.f32 %v196, %v199
      %s201 = sld [smem:[#allocation3 + $0x102]]
      %v202 = vstv %s201
      %v203 = vmul.f32 %v162, %v202
      %v204 = vadd.f32 %v200, %v203
      %s205 = sld [smem:[#allocation4 + $0x2]]
      %v206 = vstv %s205
      %v207 = vadd.f32 %v204, %v206
      %v208 = vmax.f32 %v207, 0.0
      %v209 = vadd.f32 %v193, %v208
      %s210 = sld [smem:[#allocation3 + $0x180]]
      %v211 = vstv %s210
      %v212 = vmul.f32 %v158, %v211
      %s213 = sld [smem:[#allocation3 + $0x181]]
      %v214 = vstv %s213
      %v215 = vmul.f32 %v160, %v214
      %v216 = vadd.f32 %v212, %v215
      %s217 = sld [smem:[#allocation3 + $0x182]]
      %v218 = vstv %s217
      %v219 = vmul.f32 %v162, %v218
      %v220 = vadd.f32 %v216, %v219
      %s221 = sld [smem:[#allocation4 + $0x3]]
      %v222 = vstv %s221
      %v223 = vadd.f32 %v220, %v222
      %v224 = vmax.f32 %v223, 0.0
      %v225 = vadd.f32 %v209, %v224
      %s226 = sld [smem:[#allocation3 + $0x200]]
      %v227 = vstv %s226
      %v228 = vmul.f32 %v158, %v227
      %s229 = sld [smem:[#allocation3 + $0x201]]
      %v230 = vstv %s229
      %v231 = vmul.f32 %v160, %v230
      %v232 = vadd.f32 %v228, %v231
      %s233 = sld [smem:[#allocation3 + $0x202]]
      %v234 = vstv %s233
      %v235 = vmul.f32 %v162, %v234
      %v236 = vadd.f32 %v232, %v235
      %s237 = sld [smem:[#allocation4 + $0x4]]
      %v238 = vstv %s237
      %v239 = vadd.f32 %v236, %v238
      %v240 = vmax.f32 %v239, 0.0
      %v241 = vadd.f32 %v225, %v240
      %s242 = sld [smem:[#allocation3 + $0x280]]
      %v243 = vstv %s242
      %v244 = vmul.f32 %v158, %v243
      %s245 = sld [smem:[#allocation3 + $0x281]]
      %v246 = vstv %s245
      %v247 = vmul.f32 %v160, %v246
      %v248 = vadd.f32 %v244, %v247
      %s249 = sld [smem:[#allocation3 + $0x282]]
      %v250 = vstv %s249
      %v251 = vmul.f32 %v162, %v250
      %v252 = vadd.f32 %v248, %v251
      %s253 = sld [smem:[#allocation4 + $0x5]]
      %v254 = vstv %s253
      %v255 = vadd.f32 %v252, %v254
      %v256 = vmax.f32 %v255, 0.0
      %v257 = vadd.f32 %v241, %v256
      %s258 = sld [smem:[#allocation3 + $0x300]]
      %v259 = vstv %s258
      %v260 = vmul.f32 %v158, %v259
      %s261 = sld [smem:[#allocation3 + $0x301]]
      %v262 = vstv %s261
      %v263 = vmul.f32 %v160, %v262
      %v264 = vadd.f32 %v260, %v263
      %s265 = sld [smem:[#allocation3 + $0x302]]
      %v266 = vstv %s265
      %v267 = vmul.f32 %v162, %v266
      %v268 = vadd.f32 %v264, %v267
      %s269 = sld [smem:[#allocation4 + $0x6]]
      %v270 = vstv %s269
      %v271 = vadd.f32 %v268, %v270
      %v272 = vmax.f32 %v271, 0.0
      %v273 = vadd.f32 %v257, %v272
      %v274 = vmul.f32 %v273, 0.14285715
      %275 = vst [vmem:[%s157] sm:$0x3] %v274
      %p276 = scmp.lt.s32.totalorder %s28, 1
      %s277 = scalar_select %p276, %s28, 1
      %p278 = scmp.lt.s32.totalorder %s29, 0
      %s279 = scalar_select %p278, %s29, 0
      %s280 = sadd.s32 %s279, %s277
      %s281 = smul.addr %s280, 2
      %s282 = scalar_lea.vmem %s3, %s281
      // Predicated region
      $region25: #{model_forward.1} parent=23 // pred_check
        %p283 = pneg %p84
      $region26: #{model_forward.1} parent=23 // pred_check_branch
        %285 = sbr.rel (%p283) target = $region28
      $region27: #{model_forward.1} parent=23 // pred_region
        _
      $region28: #{model_forward.1} parent=23 // pred_fallthru
        _
    $region24: #{model_forward.1} parent=5 // pred_fallthru
      _
    %p286 = scmp.le.s32.totalorder 2, %s19
    // Predicated region
    $region29: #{model_forward.1} parent=5 // pred_check
      %p287 = pneg %p286
    $region30: #{model_forward.1} parent=5 // pred_check_branch
      %289 = sbr.rel (%p287) target = $region32
    $region31: #{model_forward.1} parent=5 // pred_region
      %s290 = ssub.s32 %s19, 2
      // Predicated region
      $region33: #{model_forward.1} parent=31 // pred_check
        %p291 = pneg %p90
      $region34: #{model_forward.1} parent=31 // pred_check_branch
        %293 = sbr.rel (%p291) target = $region36
      $region35: #{model_forward.1} parent=31 // pred_region
        %p294 = scmp.lt.s32.totalorder %s30, 1
        %s295 = scalar_select %p294, %s30, 1
        %p296 = scmp.lt.s32.totalorder %s31, 0
        %s297 = scalar_select %p296, %s31, 0
        %s298 = sadd.s32 %s297, %s295
        %s299 = smul.addr %s298, 2
        %s300 = scalar_lea.vmem %s3, %s299
      $region36: #{model_forward.1} parent=31 // pred_fallthru
        _
    $region32: #{model_forward.1} parent=5 // pred_fallthru
      _
  $region6: #{model_forward.1} parent=0 // loop_footer
    %s23 = sadd.s32 1, %s19
  $region7: #{model_forward.1} parent=0 // loop_footer_branch
    %18 = sbr.rel target = $region3
  $region8: #{model_forward.1} parent=0 // loop_exit
    _

</llo_original>
